<compile_context>
chip_gen: v6e
topology: v6e:2x2x1
jax: 0.10.0
libtpu: 0.0.40
codegen_flags: <defaults>
</compile_context>

<pallas_src>
import jax
import jax.numpy as jnp
from jax.experimental import pallas as pl
from jax.experimental.pallas import tpu as pltpu


NUM_CHOICES = 4
_LANE = 128   # TPU lane width; weight cols padded to this for an aligned transpose


def qa_head_kernel(x_ref, w_ref, b_ref, o_ref):
    """One row-tile of the Linear(H -> 4) head, written lane-dense.

    x_ref: (tm, H)   activation tile (bf16/f32), canonical moving MXU operand
    w_ref: (H, 128)  weight.T zero-padded to 128 output columns (cols 4.. == 0)
    b_ref: (4, 1)    bias column, f32
    o_ref: (4, tm)   transposed f32 logits tile (lane-dense last dim)
    """
    # Canonical (m,k)x(k,n): the big x tile is never relayed out; accumulate f32.
    acc = jnp.dot(x_ref[...], w_ref[...], preferred_element_type=jnp.float32)  # (tm, 128)
    # Transpose only the (small, fully aligned) result, keep the 4 real rows.
    acc_t = acc.T                                                               # (128, tm)
    o_ref[...] = (acc_t[:NUM_CHOICES, :] + b_ref[...]).astype(o_ref.dtype)


def _round_up(x, m):
    return ((x + m - 1) // m) * m


def _cdiv(a, b):
    return (a + b - 1) // b


def qa_outputs_pallas(sequence_output, weight, bias, *, tm_max=4096,
                      per_buf_budget=12 << 20, vmem_limit=48 << 20):
    """Pallas implementation of `self.qa_outputs(sequence_output)`.

    sequence_output: [B, S, H]   (f32 or bf16)
    weight:          [4, H]      PyTorch nn.Linear layout
    bias:            [4]
    returns:         [B, S, 4]   float32 logits
    """
    B, S, H = sequence_output.shape
    M = B * S
    act_dtype = sequence_output.dtype
    dbytes = jnp.dtype(act_dtype).itemsize

    x = sequence_output.reshape(M, H)

    # --- Row-tile selection --------------------------------------------------
    if M < _LANE:
        # Tiny input: pad once to a single 128-row tile (cheap, bounded copy).
        M_eff = _LANE
        x = jnp.pad(x, ((0, M_eff - M), (0, 0)))
        tm = _LANE
    else:
        # No padding copy: ragged final block (if any) is masked by Pallas.
        M_eff = M
        # Biggest lane-aligned tile whose double-buffered pair stays in budget.
        tm = (per_buf_budget // (H * dbytes)) // _LANE * _LANE
        tm = max(_LANE, min(tm_max, tm))
        # First block must stay fully in-bounds (only the last may be ragged).
        tm = min(tm, (M // _LANE) * _LANE)
        # Keep >= 2 grid programs so ("parallel",) shards across both v7x TCs.
        if M >= 2 * _LANE:
            tm = min(tm, _round_up(_cdiv(M, 2), _LANE))
    grid_m = _cdiv(M_eff, tm)

    # --- Operands --------------------------------------------------------------
    # Weight in canonical (K, N) orientation, zero-padded to a full 128-lane
    # output tile (free on the MXU; guarantees an aligned in-kernel transpose).
    w_t = jnp.zeros((H, _LANE), act_dtype).at[:, :NUM_CHOICES].set(
        weight.T.astype(act_dtype))
    b_col = bias.reshape(NUM_CHOICES, 1).astype(jnp.float32)

    cost = pl.CostEstimate(
        flops=2 * M * H * NUM_CHOICES,
        transcendentals=0,
        bytes_accessed=(M * H * dbytes            # activations (single pass)
                        + H * _LANE * dbytes      # resident padded weight
                        + NUM_CHOICES * M * 4),   # f32 logits
    )

    out_t = pl.pallas_call(
        qa_head_kernel,
        out_shape=jax.ShapeDtypeStruct((NUM_CHOICES, M_eff), jnp.float32),
        grid_spec=pltpu.PrefetchScalarGridSpec(
            num_scalar_prefetch=0,
            grid=(grid_m,),
            in_specs=[
                # Streamed activation tile (double-buffered by Pallas).
                pl.BlockSpec((tm, H), lambda i: (i, 0)),
                # Resident padded weight (same block every step).
                pl.BlockSpec((H, _LANE), lambda i: (0, 0)),
                # Bias column.
                pl.BlockSpec((NUM_CHOICES, 1), lambda i: (0, 0)),
            ],
            # Lane-dense transposed logits slab: last dim is tm (multiple of 128).
            out_specs=pl.BlockSpec((NUM_CHOICES, tm), lambda i: (0, i)),
        ),
        compiler_params=pltpu.CompilerParams(
            dimension_semantics=("parallel",),
            vmem_limit_bytes=vmem_limit,
        ),
        cost_estimate=cost,
    )(x, w_t, b_col)

    # (4, M_eff) -> drop any pad -> (M, 4) -> (B, S, 4); float32 logits.
    # (Downstream consumers could read the (4, M) slab directly to skip this.)
    return out_t[:, :M].T.reshape(B, S, NUM_CHOICES)


def pretrain_model_stub(inputs_embeds, attention_mask=None):
    """Stand-in for the external pretrained backbone.

    # TODO(synk): the HuggingFace `pretrain_model` backbone is an external
    # dependency and is not reimplemented here; its output (`outputs[0]`, the
    # last hidden state) is treated as the kernel input.
    """
    del attention_mask
    return inputs_embeds  # [B, S, H]


class MultipleChoiceQAPallas:
    """JAX/Pallas port of MultipleChoiceQA (head only; backbone stubbed)."""

    def __init__(self, hidden_size, key):
        kw, kb = jax.random.split(key)
        # nn.Linear(hidden_size, 4): weight [4, H], bias [4]
        bound = 1.0 / jnp.sqrt(hidden_size)
        self.weight = jax.random.uniform(kw, (NUM_CHOICES, hidden_size),
                                         minval=-bound, maxval=bound,
                                         dtype=jnp.float32)
        self.bias = jax.random.uniform(kb, (NUM_CHOICES,),
                                       minval=-bound, maxval=bound,
                                       dtype=jnp.float32)

    def __call__(self, inputs_embeds, attention_mask=None):
        sequence_output = pretrain_model_stub(inputs_embeds, attention_mask)
        logits = qa_outputs_pallas(sequence_output, self.weight, self.bias)
        return logits


if __name__ == "__main__":
    key = jax.random.PRNGKey(0)
    k_emb, k_params = jax.random.split(key)

    # Small shapes consistent with the forward: batch=2, seq=8, hidden=32.
    B, S, H = 2, 8, 32
    inputs_embeds = jax.random.normal(k_emb, (B, S, H), dtype=jnp.float32)
    attention_mask = jnp.ones((B, S), dtype=jnp.int32)

    model = MultipleChoiceQAPallas(hidden_size=H, key=k_params)

    logits = model(inputs_embeds, attention_mask)
    logits = jax.block_until_ready(logits)

    # Correctness check against a plain-JAX reference of the linear head.
    ref = inputs_embeds @ model.weight.T + model.bias
    assert logits.shape == (B, S, NUM_CHOICES)
    assert logits.dtype == jnp.float32
    assert jnp.allclose(logits, ref, atol=1e-5, rtol=1e-5)

    print("KERNEL_OK")
</pallas_src>

<mosaic_0001>
module attributes {stable_mosaic.version = 11 : i64} {
  func.func @qa_head_kernel(%arg0: i32, %arg1: memref<128x32xf32, #tpu.memory_space<vmem>>, %arg2: memref<32x128xf32, #tpu.memory_space<vmem>>, %arg3: memref<4x1xf32, #tpu.memory_space<vmem>>, %arg4: memref<4x128xf32, #tpu.memory_space<vmem>>) attributes {dimension_semantics = [#tpu.dimension_semantics<parallel>], iteration_bounds = array<i64: 1>, scalar_prefetch = 0 : i64, scratch_operands = 0 : i64, tpu.core_type = #tpu.core_type<tc>, window_params = [{transform_indices = @transform_0, window_bounds = array<i64: 128, 32>}, {pipeline_mode = #tpu.pipeline_mode<synchronous>, transform_indices = @transform_1, window_bounds = array<i64: 32, 128>}, {pipeline_mode = #tpu.pipeline_mode<synchronous>, transform_indices = @transform_2, window_bounds = array<i64: 4, 1>}, {transform_indices = @transform_3, window_bounds = array<i64: 4, 128>}]} {
    %c0 = arith.constant 0 : index
    %c0_0 = arith.constant 0 : index
    %0 = vector.load %arg1[%c0, %c0_0] : memref<128x32xf32, #tpu.memory_space<vmem>>, vector<128x32xf32>
    %c0_1 = arith.constant 0 : index
    %c0_2 = arith.constant 0 : index
    %1 = vector.load %arg2[%c0_1, %c0_2] : memref<32x128xf32, #tpu.memory_space<vmem>>, vector<32x128xf32>
    %cst = arith.constant dense<0.000000e+00> : vector<128x128xf32>
    %2 = tpu.matmul %0, %1, %cst {dimension_numbers = #tpu.dot_dimension_numbers<[1], [0], [0], [1], [0, 0, 1, 1], [], []>} : vector<128x32xf32>, vector<32x128xf32>, vector<128x128xf32> -> vector<128x128xf32>
    %3 = tpu.transpose %2, [1, 0] : vector<128x128xf32> -> vector<128x128xf32>
    %4 = vector.extract_strided_slice %3 {offsets = [0, 0], sizes = [4, 128], strides = [1, 1]} : vector<128x128xf32> to vector<4x128xf32>
    %c0_3 = arith.constant 0 : index
    %c0_4 = arith.constant 0 : index
    %5 = vector.load %arg3[%c0_3, %c0_4] : memref<4x1xf32, #tpu.memory_space<vmem>>, vector<4x1xf32>
    %6 = vector.broadcast %5 : vector<4x1xf32> to vector<4x128xf32>
    %7 = arith.addf %4, %6 : vector<4x128xf32>
    %c0_5 = arith.constant 0 : index
    %c0_6 = arith.constant 0 : index
    %8 = vector.load %arg4[%c0_5, %c0_6] : memref<4x128xf32, #tpu.memory_space<vmem>>, vector<4x128xf32>
    tpu.vector_store %arg4[%c0_5, %c0_6], %7 {strides = array<i32>} : memref<4x128xf32, #tpu.memory_space<vmem>>, vector<4x128xf32>,
    return
  }
  func.func @transform_0(%arg0: i32) -> (i32, i32) {
    %c0_i32 = arith.constant 0 : i32
    %c0_i32_0 = arith.constant 0 : i32
    return %arg0, %c0_i32 : i32, i32
  }
  func.func @transform_1(%arg0: i32) -> (i32, i32) {
    %c0_i32 = arith.constant 0 : i32
    %c0_i32_0 = arith.constant 0 : i32
    %c0_i32_1 = arith.constant 0 : i32
    return %c0_i32, %c0_i32_0 : i32, i32
  }
  func.func @transform_2(%arg0: i32) -> (i32, i32) {
    %c0_i32 = arith.constant 0 : i32
    %c0_i32_0 = arith.constant 0 : i32
    %c0_i32_1 = arith.constant 0 : i32
    return %c0_i32, %c0_i32_0 : i32, i32
  }
  func.func @transform_3(%arg0: i32) -> (i32, i32) {
    %c0_i32 = arith.constant 0 : i32
    %c0_i32_0 = arith.constant 0 : i32
    return %c0_i32, %arg0 : i32, i32
  }
}

</mosaic_0001>

<llo_original>
// kernel: tpu_custom_call.1
$region0: #{tpu_custom_call.1}
  #allocation0 [shape = 'u32[]', space=smem, size = 0x4, offset = 0x4, fixed_abs, tag = 'smem constant byte address 0x4 - core index']
  #allocation1 [shape = 'u32[144,128]{1,0:T(1,128)}', space=vmem, size = 0x12000, scoped, tag = 'internal scratch']
  %s0 = inlined_call_operand.vmem [shape: f32[128,32], index: 0, kind: input, shape index: {}]
  %s1 = inlined_call_operand.vmem [shape: f32[32,128], index: 1, kind: input, shape index: {}]
  %s2 = inlined_call_operand.vmem [shape: f32[4,1], index: 2, kind: input, shape index: {}]
  %s3 = inlined_call_operand.hbm [shape: f32[4,128], index: 3, kind: output, shape index: {}]
  %s4 = sld [smem:[#allocation0]]
  $region22: #{tpu_custom_call.1} parent=0
    _
  %s6 = ssub.s32 1, %s4
  %s7 = scalar_select 0, %s6, %s4
  $region1: #{tpu_custom_call.1} parent=0
    #allocation2 [shape = 'u8[2048]{0}', space=vmem, size = 0x800, scoped, tag = 'output window, operand 0, single buffered']
    #allocation3 [shape = 's32[1]{0}', space=sflag, size = 0x4, scoped, tag = 'scoped memory for tpu_custom_call.1']
    %8 = vsyncpa [#allocation3], 0
    // Predicated region
    $region2: #{tpu_custom_call.1} parent=1 // pred_check
      _
    $region3: #{tpu_custom_call.1} parent=1 // pred_check_branch
      %10 = sbr.rel (0) target = $region5
    $region4: #{tpu_custom_call.1} parent=1 // pred_region
      _
    $region5: #{tpu_custom_call.1} parent=1 // pred_fallthru
      _
    // Predicated region
    $region6: #{tpu_custom_call.1} parent=1 // pred_check
      _
    $region7: #{tpu_custom_call.1} parent=1 // pred_check_branch
      %12 = sbr.rel (0) target = $region9
    $region8: #{tpu_custom_call.1} parent=1 // pred_region
      _
    $region9: #{tpu_custom_call.1} parent=1 // pred_fallthru
      _
    // Predicated region
    $region10: #{tpu_custom_call.1} parent=1 // pred_check
      _
    $region11: #{tpu_custom_call.1} parent=1 // pred_check_branch
      %14 = sbr.rel (0) target = $region13
    $region12: #{tpu_custom_call.1} parent=1 // pred_region
      _
    $region13: #{tpu_custom_call.1} parent=1 // pred_fallthru
      _
    %v15 = vld [vmem:[%s0] sm:$0xff]
    %v16 = vld [vmem:[%s0 + $0x8] sm:$0xff]
    %v17 = vld [vmem:[%s0 + $0x10] sm:$0xff]
    %v18 = vld [vmem:[%s0 + $0x18] sm:$0xff]
    %v19 = vld [vmem:[%s0 + $0x20] sm:$0xff]
    %v20 = vld [vmem:[%s0 + $0x28] sm:$0xff]
    %v21 = vld [vmem:[%s0 + $0x30] sm:$0xff]
    %v22 = vld [vmem:[%s0 + $0x38] sm:$0xff]
    %v23 = vld [vmem:[%s0 + $0x40] sm:$0xff]
    %v24 = vld [vmem:[%s0 + $0x48] sm:$0xff]
    %v25 = vld [vmem:[%s0 + $0x50] sm:$0xff]
    %v26 = vld [vmem:[%s0 + $0x58] sm:$0xff]
    %v27 = vld [vmem:[%s0 + $0x60] sm:$0xff]
    %v28 = vld [vmem:[%s0 + $0x68] sm:$0xff]
    %v29 = vld [vmem:[%s0 + $0x70] sm:$0xff]
    %v30 = vld [vmem:[%s0 + $0x78] sm:$0xff]
    %v31 = vld [vmem:[%s1] sm:$0xff]
    %v32 = vld [vmem:[%s1 + $0x8] sm:$0xff]
    %v33 = vld [vmem:[%s1 + $0x10] sm:$0xff]
    %v34 = vld [vmem:[%s1 + $0x18] sm:$0xff]
    %vm35 = vcmask 261120
    %v37 = vsel %vm35, %v15, 0
    %v40 = vsel %vm35, %v16, 0
    %v43 = vsel %vm35, %v17, 0
    %v46 = vsel %vm35, %v18, 0
    %v49 = vsel %vm35, %v19, 0
    %v52 = vsel %vm35, %v20, 0
    %v55 = vsel %vm35, %v21, 0
    %v58 = vsel %vm35, %v22, 0
    %v61 = vsel %vm35, %v23, 0
    %v64 = vsel %vm35, %v24, 0
    %v67 = vsel %vm35, %v25, 0
    %v70 = vsel %vm35, %v26, 0
    %v73 = vsel %vm35, %v27, 0
    %v76 = vsel %vm35, %v28, 0
    %v79 = vsel %vm35, %v29, 0
    %v82 = vsel %vm35, %v30, 0
    %84 = vmatprep.subr.mxu0 0.0
    %85 = vmatpush1.msra.mxu0 0.0
    %86 = vmatprep.subr.mxu0 0.0
    %87 = vmatpush1.msra.mxu0 0.0
    %88 = vmatprep.subr.mxu0 0.0
    %89 = vmatpush1.msra.mxu0 0.0
    %90 = vmatprep.subr.mxu0 0.0
    %91 = vmatpush1.msra.mxu0 0.0
    %92 = vmatprep.subr.mxu0 0.0
    %93 = vmatpush1.msra.mxu0 0.0
    %94 = vmatprep.subr.mxu0 0.0
    %95 = vmatpush1.msra.mxu0 0.0
    %96 = vmatprep.subr.mxu0 0.0
    %97 = vmatpush1.msra.mxu0 0.0
    %98 = vmatprep.subr.mxu0 0.0
    %99 = vmatpush1.msra.mxu0 0.0
    %100 = vmatprep.subr.mxu0 0.0
    %101 = vmatpush1.msra.mxu0 0.0
    %102 = vmatprep.subr.mxu0 0.0
    %103 = vmatpush1.msra.mxu0 0.0
    %104 = vmatprep.subr.mxu0 0.0
    %105 = vmatpush1.msra.mxu0 0.0
    %106 = vmatprep.subr.mxu0 0.0
    %107 = vmatpush1.msra.mxu0 0.0
    %108 = vmatprep.subr.mxu0 0.0
    %109 = vmatpush1.msra.mxu0 %v34
    %110 = vmatprep.subr.mxu0 0.0
    %111 = vmatpush1.msra.mxu0 %v33
    %112 = vmatprep.subr.mxu0 0.0
    %113 = vmatpush1.msra.mxu0 %v32
    %114 = vmatprep.subr.mxu0 0.0
    %115 = vmatpush1.msra.mxu0 %v31
    %116 = vmatprep.subr.mxu0 0.0
    %117 = vmatpush2.msra.mxu0 0.0
    %118 = vmatprep.subr.mxu0 0.0
    %119 = vmatpush2.msra.mxu0 0.0
    %120 = vmatprep.subr.mxu0 0.0
    %121 = vmatpush2.msra.mxu0 0.0
    %122 = vmatprep.subr.mxu0 0.0
    %123 = vmatpush2.msra.mxu0 0.0
    %124 = vmatprep.subr.mxu0 0.0
    %125 = vmatpush2.msra.mxu0 0.0
    %126 = vmatprep.subr.mxu0 0.0
    %127 = vmatpush2.msra.mxu0 0.0
    %128 = vmatprep.subr.mxu0 0.0
    %129 = vmatpush2.msra.mxu0 0.0
    %130 = vmatprep.subr.mxu0 0.0
    %131 = vmatpush2.msra.mxu0 0.0
    %132 = vmatprep.subr.mxu0 0.0
    %133 = vmatpush2.msra.mxu0 0.0
    %134 = vmatprep.subr.mxu0 0.0
    %135 = vmatpush2.msra.mxu0 0.0
    %136 = vmatprep.subr.mxu0 0.0
    %137 = vmatpush2.msra.mxu0 0.0
    %138 = vmatprep.subr.mxu0 0.0
    %139 = vmatpush2.msra.mxu0 0.0
    %140 = vmatprep.subr.mxu0 0.0
    %141 = vmatpush2.msra.mxu0 0.0
    %142 = vmatprep.subr.mxu0 0.0
    %143 = vmatpush2.msra.mxu0 0.0
    %144 = vmatprep.subr.mxu0 0.0
    %145 = vmatpush2.msra.mxu0 0.0
    %146 = vmatprep.subr.mxu0 0.0
    %147 = vmatpush2.msra.mxu0 0.0
    %148 = vmatprep.mubr.f32.mxu0 0.0
    %149 = vmatmul.mubr.f32.gmra.mxu0 %v37
    %v150 = vpop.f32.mrf.mxu0
    %v151 = vadd.f32 0.0, %v150
    %v152 = vpop.f32.mrf.mxu0
    %153 = vmatprep.mubr.f32.mxu0 0.0
    %154 = vmatmul.mubr.f32.gmra.mxu0 %v40
    %v155 = vpop.f32.mrf.mxu0
    %v156 = vadd.f32 0.0, %v155
    %v157 = vpop.f32.mrf.mxu0
    %158 = vmatprep.mubr.f32.mxu0 0.0
    %159 = vmatmul.mubr.f32.gmra.mxu0 %v43
    %v160 = vpop.f32.mrf.mxu0
    %v161 = vadd.f32 0.0, %v160
    %v162 = vpop.f32.mrf.mxu0
    %163 = vmatprep.mubr.f32.mxu0 0.0
    %164 = vmatmul.mubr.f32.gmra.mxu0 %v46
    %v165 = vpop.f32.mrf.mxu0
    %v166 = vadd.f32 0.0, %v165
    %v167 = vpop.f32.mrf.mxu0
    %168 = vmatprep.mubr.f32.mxu0 0.0
    %169 = vmatmul.mubr.f32.gmra.mxu0 %v49
    %v170 = vpop.f32.mrf.mxu0
    %v171 = vadd.f32 0.0, %v170
    %v172 = vpop.f32.mrf.mxu0
    %173 = vmatprep.mubr.f32.mxu0 0.0
    %174 = vmatmul.mubr.f32.gmra.mxu0 %v52
    %v175 = vpop.f32.mrf.mxu0
    %v176 = vadd.f32 0.0, %v175
    %v177 = vpop.f32.mrf.mxu0
    %178 = vmatprep.mubr.f32.mxu0 0.0
    %179 = vmatmul.mubr.f32.gmra.mxu0 %v55
    %v180 = vpop.f32.mrf.mxu0
    %v181 = vadd.f32 0.0, %v180
    %v182 = vpop.f32.mrf.mxu0
    %183 = vmatprep.mubr.f32.mxu0 0.0
    %184 = vmatmul.mubr.f32.gmra.mxu0 %v58
    %v185 = vpop.f32.mrf.mxu0
    %v186 = vadd.f32 0.0, %v185
    %v187 = vpop.f32.mrf.mxu0
    %188 = vmatprep.mubr.f32.mxu0 0.0
    %189 = vmatmul.mubr.f32.gmra.mxu0 %v61
    %v190 = vpop.f32.mrf.mxu0
    %v191 = vadd.f32 0.0, %v190
    %v192 = vpop.f32.mrf.mxu0
    %193 = vmatprep.mubr.f32.mxu0 0.0
    %194 = vmatmul.mubr.f32.gmra.mxu0 %v64
    %v195 = vpop.f32.mrf.mxu0
    %v196 = vadd.f32 0.0, %v195
    %v197 = vpop.f32.mrf.mxu0
    %198 = vmatprep.mubr.f32.mxu0 0.0
    %199 = vmatmul.mubr.f32.gmra.mxu0 %v67
    %v200 = vpop.f32.mrf.mxu0
    %v201 = vadd.f32 0.0, %v200
    %v202 = vpop.f32.mrf.mxu0
    %203 = vmatprep.mubr.f32.mxu0 0.0
    %204 = vmatmul.mubr.f32.gmra.mxu0 %v70
    %v205 = vpop.f32.mrf.mxu0
    %v206 = vadd.f32 0.0, %v205
    %v207 = vpop.f32.mrf.mxu0
    %208 = vmatprep.mubr.f32.mxu0 0.0
    %209 = vmatmul.mubr.f32.gmra.mxu0 %v73
    %v210 = vpop.f32.mrf.mxu0
    %v211 = vadd.f32 0.0, %v210
    %v212 = vpop.f32.mrf.mxu0
    %213 = vmatprep.mubr.f32.mxu0 0.0
    %214 = vmatmul.mubr.f32.gmra.mxu0 %v76
    %v215 = vpop.f32.mrf.mxu0
    %v216 = vadd.f32 0.0, %v215
    %v217 = vpop.f32.mrf.mxu0
    %218 = vmatprep.mubr.f32.mxu0 0.0
    %219 = vmatmul.mubr.f32.gmra.mxu0 %v79
    %v220 = vpop.f32.mrf.mxu0
    %v221 = vadd.f32 0.0, %v220
    %v222 = vpop.f32.mrf.mxu0
    %223 = vmatprep.mubr.f32.mxu0 0.0
    %224 = vmatmul.mubr.f32.gmra.mxu0 %v82
    %v225 = vpop.f32.mrf.mxu0
    %v226 = vadd.f32 0.0, %v225
    %v227 = vpop.f32.mrf.mxu0
    %228 = vdwg.mxu0
    %229 = vxpose.xlu0.b32.start [1/16] %v151, 128
    %230 = vxpose.xlu0.b32.cont [2/16] %v156, 128
    %231 = vxpose.xlu0.b32.cont [3/16] %v161, 128
    %232 = vxpose.xlu0.b32.cont [4/16] %v166, 128
    %233 = vxpose.xlu0.b32.cont [5/16] %v171, 128
    %234 = vxpose.xlu0.b32.cont [6/16] %v176, 128
    %235 = vxpose.xlu0.b32.cont [7/16] %v181, 128
    %236 = vxpose.xlu0.b32.cont [8/16] %v186, 128
    %237 = vxpose.xlu0.b32.cont [9/16] %v191, 128
    %238 = vxpose.xlu0.b32.cont [10/16] %v196, 128
    %239 = vxpose.xlu0.b32.cont [11/16] %v201, 128
    %240 = vxpose.xlu0.b32.cont [12/16] %v206, 128
    %241 = vxpose.xlu0.b32.cont [13/16] %v211, 128
    %242 = vxpose.xlu0.b32.cont [14/16] %v216, 128
    %243 = vxpose.xlu0.b32.cont [15/16] %v221, 128
    %244 = vxpose.xlu0.b32.end [16/16] %v226, 128
    %v245 = vpop.trf.xlu0
    %v246 = vpop.trf.xlu0
    %v247 = vpop.trf.xlu0
    %v248 = vpop.trf.xlu0
    %v249 = vpop.trf.xlu0
    %v250 = vpop.trf.xlu0
    %v251 = vpop.trf.xlu0
    %v252 = vpop.trf.xlu0
    %v253 = vpop.trf.xlu0
    %v254 = vpop.trf.xlu0
    %v255 = vpop.trf.xlu0
    %v256 = vpop.trf.xlu0
    %v257 = vpop.trf.xlu0
    %v258 = vpop.trf.xlu0
    %v259 = vpop.trf.xlu0
    %v260 = vpop.trf.xlu0
    %v261 = vld [vmem:[%s2] sm:$0xf]
    %263 = vset.pattern.permute.xlu0 0
    %264 = vperm.xlu0 %263, %v261
    %v265 = vpop.permute.xlu0 %264
    %v267 = vadd.f32 %v245, %v265
    %268 = vst [vmem:[#allocation2] sm:$0xf] %v267
    // Predicated region
    $region14: #{tpu_custom_call.1} parent=1 // pred_check
      _
    $region15: #{tpu_custom_call.1} parent=1 // pred_check_branch
      %270 = sbr.rel (0) target = $region17
    $region16: #{tpu_custom_call.1} parent=1 // pred_region
      %s272 = ssub.s32 64, 64
      %273 = vsyncadd [#allocation3], %s272
      %s275 = sshll.u32 [#allocation2], 4
      %s276 = int_to_ptr.vmem [resolvable:$true] %s275
      %278 = dma.vmem_to_hbm [thread:$0]  %s276, 64, %s3, [#allocation3]
    $region17: #{tpu_custom_call.1} parent=1 // pred_fallthru
      _
    // Predicated region
    $region18: #{tpu_custom_call.1} parent=1 // pred_check
      _
    $region19: #{tpu_custom_call.1} parent=1 // pred_check_branch
      %280 = sbr.rel (0) target = $region21
    $region20: #{tpu_custom_call.1} parent=1 // pred_region
      %281 = dma.done [#allocation3], 64
    $region21: #{tpu_custom_call.1} parent=1 // pred_fallthru
      _
    %282 = vsyncpa [#allocation3], 1

</llo_original>
